<compile_context>
chip_gen: v7x
topology: tpu7x:2x2x1
jax: 0.10.0
libtpu: 0.0.40
codegen_flags: <defaults>
</compile_context>

<pallas_src>
import functools

import jax
import jax.numpy as jnp
from jax import lax
from jax.experimental import pallas as pl
from jax.experimental.pallas import tpu as pltpu


def _frnn_kernel(center_ref, pos_ref, out_ref, *, radius, n_neighbor, n_points):
    """One (batch, S-tile): (3, TS) centroids vs (N_pad, 3) points -> (K, TS)."""
    ctr = center_ref[0]                        # (3, TS)   centroid xyz, S on lanes
    pts = pos_ref[0]                           # (N_pad, 3) point xyz, N on sublanes
    n_pad = pts.shape[0]
    ts = ctr.shape[1]
    K = n_neighbor
    sentinel = n_points                        # "out of radius" marker (== N)

    # Squared pairwise distances via per-coordinate VPU expansion (no MXU,
    # no cross-lane norm reductions).  dist[n, s] = || p_n - c_s ||^2
    dx = pts[:, 0:1] - ctr[0:1, :]             # (N_pad, TS)
    dy = pts[:, 1:2] - ctr[1:2, :]
    dz = pts[:, 2:3] - ctr[2:3, :]
    dist = dx * dx + dy * dy + dz * dz

    # Keep a point iff NOT (dist > r^2) (matches torch masking) AND it is a
    # real (non-pad) point.  Collapse everything into a single candidate-index
    # array so dist/keep die immediately (low live-vreg pressure in the loop).
    idx = lax.broadcasted_iota(jnp.int32, (n_pad, ts), 0)
    valid = jnp.logical_and(jnp.logical_not(dist > radius * radius),
                            idx < n_points)
    cand = jnp.where(valid, idx, sentinel)     # (N_pad, TS) int32

    # K smallest in-radius indices per centroid == "set out-of-radius to N,
    # sort ascending, take first K".  Monotone-index trick: each step picks the
    # smallest candidate strictly greater than the previous selection.
    # TODO(synk): for large K / dense clouds, tile N with early exit once every
    # centroid in the tile has K neighbors.
    prev = jnp.full((1, ts), -1, dtype=jnp.int32)
    first = None
    for k in range(K):                         # static unroll; K is small
        masked = jnp.where(cand > prev, cand, sentinel)
        sel = jnp.min(masked, axis=0, keepdims=True)      # (1, TS)
        if k == 0:
            first = sel
            out_ref[0, k:k + 1, :] = sel
        else:
            # empty slots (== N) are replaced by the first neighbor index
            out_ref[0, k:k + 1, :] = jnp.where(sel == sentinel, first, sel)
        prev = sel


def fixed_radius_near_neighbors(pos, centroids, radius, n_neighbor):
    """pos: (B, N, 3) f32, centroids: (B, S) int -> (B, S, K) int32."""
    B, N, _ = pos.shape
    S = centroids.shape[1]
    K = int(n_neighbor)

    # Glue: gather centroid coordinates (tiny) and put S on the last (lane) axis.
    center = jnp.take_along_axis(
        pos, centroids[:, :, None].astype(jnp.int32), axis=1)        # (B, S, 3)
    center_t = jnp.transpose(center, (0, 2, 1))                      # (B, 3, S)

    # Padding: N -> multiple of 8 (sublane axis), S -> multiple of 128 (lane axis).
    TS = 128
    n_pad = -(-N // 8) * 8
    s_pad = -(-S // TS) * TS
    pos_p = jnp.pad(pos, ((0, 0), (0, n_pad - N), (0, 0)))           # (B, N_pad, 3)
    center_p = jnp.pad(center_t, ((0, 0), (0, 0), (0, s_pad - S)))   # (B, 3, S_pad)

    kernel = functools.partial(
        _frnn_kernel,
        radius=float(radius),
        n_neighbor=K,
        n_points=int(N),
    )

    out = pl.pallas_call(
        kernel,
        out_shape=jax.ShapeDtypeStruct((B, K, s_pad), jnp.int32),
        grid=(B, s_pad // TS),
        in_specs=[
            pl.BlockSpec((1, 3, TS), lambda b, s: (b, 0, s)),
            # constant block index along s -> the (N_pad, 3) point block stays
            # resident across all S tiles of a batch element.
            pl.BlockSpec((1, n_pad, 3), lambda b, s: (b, 0, 0)),
        ],
        out_specs=pl.BlockSpec((1, K, TS), lambda b, s: (b, 0, s)),
        compiler_params=pltpu.CompilerParams(
            dimension_semantics=("parallel", "parallel")),
    )(center_p, pos_p)

    # (B, K, S_pad) -> (B, S, K); this transpose is only S*K elements.
    return jnp.transpose(out[:, :, :S], (0, 2, 1))


def _reference(pos, centroids, radius, n_neighbor):
    """Pure-JAX mirror of the PyTorch forward (same per-coordinate distance
    formula as the kernel, so the comparison is exact)."""
    B, N, _ = pos.shape
    center = jnp.take_along_axis(
        pos, centroids[:, :, None].astype(jnp.int32), axis=1)        # (B, S, 3)
    dx = center[:, :, None, 0] - pos[:, None, :, 0]
    dy = center[:, :, None, 1] - pos[:, None, :, 1]
    dz = center[:, :, None, 2] - pos[:, None, :, 2]
    d = dx * dx + dy * dy + dz * dz                                  # (B, S, N)
    gi = jnp.broadcast_to(jnp.arange(N, dtype=jnp.int32), d.shape)
    gi = jnp.where(d > radius * radius, jnp.int32(N), gi)
    gi = jnp.sort(gi, axis=-1)[:, :, :n_neighbor]
    first = gi[:, :, :1]
    gi = jnp.where(gi == N, jnp.broadcast_to(first, gi.shape), gi)
    return gi


if __name__ == "__main__":
    key = jax.random.PRNGKey(0)
    B, N, S, K = 2, 64, 8, 8
    radius = 0.4

    k_pos, k_cent = jax.random.split(key)
    pos = jax.random.uniform(k_pos, (B, N, 3), dtype=jnp.float32)
    centroids = jax.random.randint(k_cent, (B, S), 0, N, dtype=jnp.int32)

    out = fixed_radius_near_neighbors(pos, centroids, radius, K)
    out = jax.block_until_ready(out)

    ref = _reference(pos, centroids, radius, K)
    assert out.shape == (B, S, K), out.shape
    assert out.dtype == jnp.int32, out.dtype
    assert bool(jnp.all(out == ref)), "Pallas result does not match reference"

    print("KERNEL_OK")
</pallas_src>

<mosaic_0001>
module attributes {stable_mosaic.version = 11 : i64} {
  func.func @_frnn_kernel(%arg0: i32, %arg1: i32, %arg2: memref<1x3x128xf32, #tpu.memory_space<vmem>>, %arg3: memref<1x64x3xf32, #tpu.memory_space<vmem>>, %arg4: memref<1x8x128xi32, #tpu.memory_space<vmem>>) attributes {dimension_semantics = [#tpu.dimension_semantics<parallel>, #tpu.dimension_semantics<parallel>], iteration_bounds = array<i64: 2, 1>, scalar_prefetch = 0 : i64, scratch_operands = 0 : i64, tpu.core_type = #tpu.core_type<tc>, window_params = [{transform_indices = @transform_0, window_bounds = array<i64: 1, 3, 128>}, {transform_indices = @transform_1, window_bounds = array<i64: 1, 64, 3>}, {transform_indices = @transform_2, window_bounds = array<i64: 1, 8, 128>}]} {
    %c0 = arith.constant 0 : index
    %c0_0 = arith.constant 0 : index
    %c0_1 = arith.constant 0 : index
    %0 = vector.load %arg2[%c0, %c0_0, %c0_1] : memref<1x3x128xf32, #tpu.memory_space<vmem>>, vector<1x3x128xf32>
    %1 = vector.shape_cast %0 : vector<1x3x128xf32> to vector<3x128xf32>
    %c0_2 = arith.constant 0 : index
    %c0_3 = arith.constant 0 : index
    %c0_4 = arith.constant 0 : index
    %2 = vector.load %arg3[%c0_2, %c0_3, %c0_4] : memref<1x64x3xf32, #tpu.memory_space<vmem>>, vector<1x64x3xf32>
    %3 = vector.shape_cast %2 : vector<1x64x3xf32> to vector<64x3xf32>
    %4 = vector.extract_strided_slice %3 {offsets = [0, 0], sizes = [64, 1], strides = [1, 1]} : vector<64x3xf32> to vector<64x1xf32>
    %5 = vector.extract_strided_slice %1 {offsets = [0, 0], sizes = [1, 128], strides = [1, 1]} : vector<3x128xf32> to vector<1x128xf32>
    %6 = vector.broadcast %4 : vector<64x1xf32> to vector<64x128xf32>
    %7 = vector.broadcast %5 : vector<1x128xf32> to vector<64x128xf32>
    %8 = arith.subf %6, %7 : vector<64x128xf32>
    %9 = vector.extract_strided_slice %3 {offsets = [0, 1], sizes = [64, 1], strides = [1, 1]} : vector<64x3xf32> to vector<64x1xf32>
    %10 = vector.extract_strided_slice %1 {offsets = [1, 0], sizes = [1, 128], strides = [1, 1]} : vector<3x128xf32> to vector<1x128xf32>
    %11 = vector.broadcast %9 : vector<64x1xf32> to vector<64x128xf32>
    %12 = vector.broadcast %10 : vector<1x128xf32> to vector<64x128xf32>
    %13 = arith.subf %11, %12 : vector<64x128xf32>
    %14 = vector.extract_strided_slice %3 {offsets = [0, 2], sizes = [64, 1], strides = [1, 1]} : vector<64x3xf32> to vector<64x1xf32>
    %15 = vector.extract_strided_slice %1 {offsets = [2, 0], sizes = [1, 128], strides = [1, 1]} : vector<3x128xf32> to vector<1x128xf32>
    %16 = vector.broadcast %14 : vector<64x1xf32> to vector<64x128xf32>
    %17 = vector.broadcast %15 : vector<1x128xf32> to vector<64x128xf32>
    %18 = arith.subf %16, %17 : vector<64x128xf32>
    %19 = arith.mulf %8, %8 : vector<64x128xf32>
    %20 = arith.mulf %13, %13 : vector<64x128xf32>
    %21 = arith.addf %19, %20 : vector<64x128xf32>
    %22 = arith.mulf %18, %18 : vector<64x128xf32>
    %23 = arith.addf %21, %22 : vector<64x128xf32>
    %24 = tpu.iota {dimensions = array<i32: 0>} : vector<64x128xi32>
    %cst = arith.constant 1.600000e-01 : f32
    %25 = vector.broadcast %cst : f32 to vector<64x128xf32>
    %26 = arith.cmpf ogt, %23, %25 : vector<64x128xf32>
    %cst_5 = arith.constant dense<true> : vector<64x128xi1>
    %27 = arith.xori %26, %cst_5 : vector<64x128xi1>
    %c64_i32 = arith.constant 64 : i32
    %28 = vector.broadcast %c64_i32 : i32 to vector<64x128xi32>
    %29 = arith.cmpi slt, %24, %28 : vector<64x128xi32>
    %30 = arith.andi %27, %29 : vector<64x128xi1>
    %c64_i32_6 = arith.constant 64 : i32
    %31 = vector.broadcast %c64_i32_6 : i32 to vector<64x128xi32>
    %32 = arith.select %30, %24, %31 : vector<64x128xi1>, vector<64x128xi32>
    %c-1_i32 = arith.constant -1 : i32
    %33 = vector.broadcast %c-1_i32 : i32 to vector<1x128xi32>
    %34 = vector.broadcast %33 : vector<1x128xi32> to vector<64x128xi32>
    %35 = arith.cmpi sgt, %32, %34 : vector<64x128xi32>
    %c64_i32_7 = arith.constant 64 : i32
    %36 = vector.broadcast %c64_i32_7 : i32 to vector<64x128xi32>
    %37 = arith.select %35, %32, %36 : vector<64x128xi1>, vector<64x128xi32>
    %cst_8 = arith.constant dense<2147483647> : vector<128xi32>
    %38 = vector.multi_reduction <minsi>, %37, %cst_8 [0] : vector<64x128xi32> to vector<128xi32>
    %39 = vector.shape_cast %38 : vector<128xi32> to vector<1x128xi32>
    %c0_9 = arith.constant 0 : index
    %c0_10 = arith.constant 0 : index
    %c0_11 = arith.constant 0 : index
    %40 = vector.load %arg4[%c0_9, %c0_10, %c0_11] : memref<1x8x128xi32, #tpu.memory_space<vmem>>, vector<1x1x128xi32>
    %41 = vector.shape_cast %40 : vector<1x1x128xi32> to vector<1x128xi32>
    %42 = vector.shape_cast %39 : vector<1x128xi32> to vector<1x1x128xi32>
    tpu.vector_store %arg4[%c0_9, %c0_10, %c0_11], %42 {strides = array<i32>} : memref<1x8x128xi32, #tpu.memory_space<vmem>>, vector<1x1x128xi32>,
    %43 = vector.broadcast %39 : vector<1x128xi32> to vector<64x128xi32>
    %44 = arith.cmpi sgt, %32, %43 : vector<64x128xi32>
    %c64_i32_12 = arith.constant 64 : i32
    %45 = vector.broadcast %c64_i32_12 : i32 to vector<64x128xi32>
    %46 = arith.select %44, %32, %45 : vector<64x128xi1>, vector<64x128xi32>
    %cst_13 = arith.constant dense<2147483647> : vector<128xi32>
    %47 = vector.multi_reduction <minsi>, %46, %cst_13 [0] : vector<64x128xi32> to vector<128xi32>
    %48 = vector.shape_cast %47 : vector<128xi32> to vector<1x128xi32>
    %c64_i32_14 = arith.constant 64 : i32
    %49 = vector.broadcast %c64_i32_14 : i32 to vector<1x128xi32>
    %50 = arith.cmpi eq, %48, %49 : vector<1x128xi32>
    %51 = arith.select %50, %39, %48 : vector<1x128xi1>, vector<1x128xi32>
    %c0_15 = arith.constant 0 : index
    %c1 = arith.constant 1 : index
    %c0_16 = arith.constant 0 : index
    %52 = vector.load %arg4[%c0_15, %c1, %c0_16] : memref<1x8x128xi32, #tpu.memory_space<vmem>>, vector<1x1x128xi32>
    %53 = vector.shape_cast %52 : vector<1x1x128xi32> to vector<1x128xi32>
    %54 = vector.shape_cast %51 : vector<1x128xi32> to vector<1x1x128xi32>
    tpu.vector_store %arg4[%c0_15, %c1, %c0_16], %54 {strides = array<i32>} : memref<1x8x128xi32, #tpu.memory_space<vmem>>, vector<1x1x128xi32>,
    %55 = vector.broadcast %48 : vector<1x128xi32> to vector<64x128xi32>
    %56 = arith.cmpi sgt, %32, %55 : vector<64x128xi32>
    %c64_i32_17 = arith.constant 64 : i32
    %57 = vector.broadcast %c64_i32_17 : i32 to vector<64x128xi32>
    %58 = arith.select %56, %32, %57 : vector<64x128xi1>, vector<64x128xi32>
    %cst_18 = arith.constant dense<2147483647> : vector<128xi32>
    %59 = vector.multi_reduction <minsi>, %58, %cst_18 [0] : vector<64x128xi32> to vector<128xi32>
    %60 = vector.shape_cast %59 : vector<128xi32> to vector<1x128xi32>
    %c64_i32_19 = arith.constant 64 : i32
    %61 = vector.broadcast %c64_i32_19 : i32 to vector<1x128xi32>
    %62 = arith.cmpi eq, %60, %61 : vector<1x128xi32>
    %63 = arith.select %62, %39, %60 : vector<1x128xi1>, vector<1x128xi32>
    %c0_20 = arith.constant 0 : index
    %c2 = arith.constant 2 : index
    %c0_21 = arith.constant 0 : index
    %64 = vector.load %arg4[%c0_20, %c2, %c0_21] : memref<1x8x128xi32, #tpu.memory_space<vmem>>, vector<1x1x128xi32>
    %65 = vector.shape_cast %64 : vector<1x1x128xi32> to vector<1x128xi32>
    %66 = vector.shape_cast %63 : vector<1x128xi32> to vector<1x1x128xi32>
    tpu.vector_store %arg4[%c0_20, %c2, %c0_21], %66 {strides = array<i32>} : memref<1x8x128xi32, #tpu.memory_space<vmem>>, vector<1x1x128xi32>,
    %67 = vector.broadcast %60 : vector<1x128xi32> to vector<64x128xi32>
    %68 = arith.cmpi sgt, %32, %67 : vector<64x128xi32>
    %c64_i32_22 = arith.constant 64 : i32
    %69 = vector.broadcast %c64_i32_22 : i32 to vector<64x128xi32>
    %70 = arith.select %68, %32, %69 : vector<64x128xi1>, vector<64x128xi32>
    %cst_23 = arith.constant dense<2147483647> : vector<128xi32>
    %71 = vector.multi_reduction <minsi>, %70, %cst_23 [0] : vector<64x128xi32> to vector<128xi32>
    %72 = vector.shape_cast %71 : vector<128xi32> to vector<1x128xi32>
    %c64_i32_24 = arith.constant 64 : i32
    %73 = vector.broadcast %c64_i32_24 : i32 to vector<1x128xi32>
    %74 = arith.cmpi eq, %72, %73 : vector<1x128xi32>
    %75 = arith.select %74, %39, %72 : vector<1x128xi1>, vector<1x128xi32>
    %c0_25 = arith.constant 0 : index
    %c3 = arith.constant 3 : index
    %c0_26 = arith.constant 0 : index
    %76 = vector.load %arg4[%c0_25, %c3, %c0_26] : memref<1x8x128xi32, #tpu.memory_space<vmem>>, vector<1x1x128xi32>
    %77 = vector.shape_cast %76 : vector<1x1x128xi32> to vector<1x128xi32>
    %78 = vector.shape_cast %75 : vector<1x128xi32> to vector<1x1x128xi32>
    tpu.vector_store %arg4[%c0_25, %c3, %c0_26], %78 {strides = array<i32>} : memref<1x8x128xi32, #tpu.memory_space<vmem>>, vector<1x1x128xi32>,
    %79 = vector.broadcast %72 : vector<1x128xi32> to vector<64x128xi32>
    %80 = arith.cmpi sgt, %32, %79 : vector<64x128xi32>
    %c64_i32_27 = arith.constant 64 : i32
    %81 = vector.broadcast %c64_i32_27 : i32 to vector<64x128xi32>
    %82 = arith.select %80, %32, %81 : vector<64x128xi1>, vector<64x128xi32>
    %cst_28 = arith.constant dense<2147483647> : vector<128xi32>
    %83 = vector.multi_reduction <minsi>, %82, %cst_28 [0] : vector<64x128xi32> to vector<128xi32>
    %84 = vector.shape_cast %83 : vector<128xi32> to vector<1x128xi32>
    %c64_i32_29 = arith.constant 64 : i32
    %85 = vector.broadcast %c64_i32_29 : i32 to vector<1x128xi32>
    %86 = arith.cmpi eq, %84, %85 : vector<1x128xi32>
    %87 = arith.select %86, %39, %84 : vector<1x128xi1>, vector<1x128xi32>
    %c0_30 = arith.constant 0 : index
    %c4 = arith.constant 4 : index
    %c0_31 = arith.constant 0 : index
    %88 = vector.load %arg4[%c0_30, %c4, %c0_31] : memref<1x8x128xi32, #tpu.memory_space<vmem>>, vector<1x1x128xi32>
    %89 = vector.shape_cast %88 : vector<1x1x128xi32> to vector<1x128xi32>
    %90 = vector.shape_cast %87 : vector<1x128xi32> to vector<1x1x128xi32>
    tpu.vector_store %arg4[%c0_30, %c4, %c0_31], %90 {strides = array<i32>} : memref<1x8x128xi32, #tpu.memory_space<vmem>>, vector<1x1x128xi32>,
    %91 = vector.broadcast %84 : vector<1x128xi32> to vector<64x128xi32>
    %92 = arith.cmpi sgt, %32, %91 : vector<64x128xi32>
    %c64_i32_32 = arith.constant 64 : i32
    %93 = vector.broadcast %c64_i32_32 : i32 to vector<64x128xi32>
    %94 = arith.select %92, %32, %93 : vector<64x128xi1>, vector<64x128xi32>
    %cst_33 = arith.constant dense<2147483647> : vector<128xi32>
    %95 = vector.multi_reduction <minsi>, %94, %cst_33 [0] : vector<64x128xi32> to vector<128xi32>
    %96 = vector.shape_cast %95 : vector<128xi32> to vector<1x128xi32>
    %c64_i32_34 = arith.constant 64 : i32
    %97 = vector.broadcast %c64_i32_34 : i32 to vector<1x128xi32>
    %98 = arith.cmpi eq, %96, %97 : vector<1x128xi32>
    %99 = arith.select %98, %39, %96 : vector<1x128xi1>, vector<1x128xi32>
    %c0_35 = arith.constant 0 : index
    %c5 = arith.constant 5 : index
    %c0_36 = arith.constant 0 : index
    %100 = vector.load %arg4[%c0_35, %c5, %c0_36] : memref<1x8x128xi32, #tpu.memory_space<vmem>>, vector<1x1x128xi32>
    %101 = vector.shape_cast %100 : vector<1x1x128xi32> to vector<1x128xi32>
    %102 = vector.shape_cast %99 : vector<1x128xi32> to vector<1x1x128xi32>
    tpu.vector_store %arg4[%c0_35, %c5, %c0_36], %102 {strides = array<i32>} : memref<1x8x128xi32, #tpu.memory_space<vmem>>, vector<1x1x128xi32>,
    %103 = vector.broadcast %96 : vector<1x128xi32> to vector<64x128xi32>
    %104 = arith.cmpi sgt, %32, %103 : vector<64x128xi32>
    %c64_i32_37 = arith.constant 64 : i32
    %105 = vector.broadcast %c64_i32_37 : i32 to vector<64x128xi32>
    %106 = arith.select %104, %32, %105 : vector<64x128xi1>, vector<64x128xi32>
    %cst_38 = arith.constant dense<2147483647> : vector<128xi32>
    %107 = vector.multi_reduction <minsi>, %106, %cst_38 [0] : vector<64x128xi32> to vector<128xi32>
    %108 = vector.shape_cast %107 : vector<128xi32> to vector<1x128xi32>
    %c64_i32_39 = arith.constant 64 : i32
    %109 = vector.broadcast %c64_i32_39 : i32 to vector<1x128xi32>
    %110 = arith.cmpi eq, %108, %109 : vector<1x128xi32>
    %111 = arith.select %110, %39, %108 : vector<1x128xi1>, vector<1x128xi32>
    %c0_40 = arith.constant 0 : index
    %c6 = arith.constant 6 : index
    %c0_41 = arith.constant 0 : index
    %112 = vector.load %arg4[%c0_40, %c6, %c0_41] : memref<1x8x128xi32, #tpu.memory_space<vmem>>, vector<1x1x128xi32>
    %113 = vector.shape_cast %112 : vector<1x1x128xi32> to vector<1x128xi32>
    %114 = vector.shape_cast %111 : vector<1x128xi32> to vector<1x1x128xi32>
    tpu.vector_store %arg4[%c0_40, %c6, %c0_41], %114 {strides = array<i32>} : memref<1x8x128xi32, #tpu.memory_space<vmem>>, vector<1x1x128xi32>,
    %115 = vector.broadcast %108 : vector<1x128xi32> to vector<64x128xi32>
    %116 = arith.cmpi sgt, %32, %115 : vector<64x128xi32>
    %c64_i32_42 = arith.constant 64 : i32
    %117 = vector.broadcast %c64_i32_42 : i32 to vector<64x128xi32>
    %118 = arith.select %116, %32, %117 : vector<64x128xi1>, vector<64x128xi32>
    %cst_43 = arith.constant dense<2147483647> : vector<128xi32>
    %119 = vector.multi_reduction <minsi>, %118, %cst_43 [0] : vector<64x128xi32> to vector<128xi32>
    %120 = vector.shape_cast %119 : vector<128xi32> to vector<1x128xi32>
    %c64_i32_44 = arith.constant 64 : i32
    %121 = vector.broadcast %c64_i32_44 : i32 to vector<1x128xi32>
    %122 = arith.cmpi eq, %120, %121 : vector<1x128xi32>
    %123 = arith.select %122, %39, %120 : vector<1x128xi1>, vector<1x128xi32>
    %c0_45 = arith.constant 0 : index
    %c7 = arith.constant 7 : index
    %c0_46 = arith.constant 0 : index
    %124 = vector.load %arg4[%c0_45, %c7, %c0_46] : memref<1x8x128xi32, #tpu.memory_space<vmem>>, vector<1x1x128xi32>
    %125 = vector.shape_cast %124 : vector<1x1x128xi32> to vector<1x128xi32>
    %126 = vector.shape_cast %123 : vector<1x128xi32> to vector<1x1x128xi32>
    tpu.vector_store %arg4[%c0_45, %c7, %c0_46], %126 {strides = array<i32>} : memref<1x8x128xi32, #tpu.memory_space<vmem>>, vector<1x1x128xi32>,
    return
  }
  func.func @transform_0(%arg0: i32, %arg1: i32) -> (i32, i32, i32) {
    %c0_i32 = arith.constant 0 : i32
    %c0_i32_0 = arith.constant 0 : i32
    return %arg0, %c0_i32, %arg1 : i32, i32, i32
  }
  func.func @transform_1(%arg0: i32, %arg1: i32) -> (i32, i32, i32) {
    %c0_i32 = arith.constant 0 : i32
    %c0_i32_0 = arith.constant 0 : i32
    %c0_i32_1 = arith.constant 0 : i32
    return %arg0, %c0_i32, %c0_i32_0 : i32, i32, i32
  }
  func.func @transform_2(%arg0: i32, %arg1: i32) -> (i32, i32, i32) {
    %c0_i32 = arith.constant 0 : i32
    %c0_i32_0 = arith.constant 0 : i32
    return %arg0, %c0_i32, %arg1 : i32, i32, i32
  }
}

</mosaic_0001>

<llo_original>
// kernel: tpu_custom_call.1
$region0: #{tpu_custom_call.1}
  #allocation0 [shape = 'u32[]', space=smem, size = 0x4, offset = 0x4, fixed_abs, tag = 'smem constant byte address 0x4 - core index']
  #allocation1 [shape = 'u32[144,128]{1,0:T(1,128)}', space=vmem, size = 0x12000, scoped, tag = 'internal scratch']
  %s0 = inlined_call_operand.vmem [shape: f32[2,3,128], index: 0, kind: input, shape index: {}]
  %s1 = inlined_call_operand.vmem [shape: f32[2,64,3], index: 1, kind: input, shape index: {}]
  %s2 = inlined_call_operand.hbm [shape: s32[2,8,128], index: 2, kind: output, shape index: {}]
  %s3 = sld [smem:[#allocation0]]
  $region41: #{tpu_custom_call.1} parent=0
    _
  %s5 = ssub.s32 1, %s3
  %s6 = scalar_select 0, %s5, %s3
  $region1: #{tpu_custom_call.1} parent=0
    #allocation2 [shape = 'u8[8192]{0}', space=vmem, size = 0x2000, scoped, tag = 'output window, operand 0']
    #allocation3 [shape = 's32[2]{0}', space=sflag, size = 0x8, scoped, tag = 'scoped memory for tpu_custom_call.1']
    %7 = vsyncpa [#allocation3], 0
    %s8 = scalar_lea.sflag [#allocation3], 1
    %9 = vsyncpa %s8, 0
    loop: start=0, step=1, limit=4
    $region2: #{tpu_custom_call.1} parent=1 // loop_pre_header
      _
    $region3: #{tpu_custom_call.1} parent=1 // loop_header
      %s11 = sphi 0, %s15
      %p12 = scmp.ge.s32.totalorder %s11, 4
      %s18 = sphi 0, %s30
      %s19 = sphi 0, %s26
      %s20 = sphi 0, %s18
      %s21 = sphi 0, %s19
      %s22 = sphi 0, %s20
      %s23 = sphi 0, %s21
      %s35 = sphi 0, %s37
      %s38 = sphi 0, %s35
      %s39 = sphi 0, %s38
      %s55 = sphi 0, %s39
      %s61 = sphi 0, %s63
      %s64 = sphi 0, %s61
      %s65 = sphi 0, %s64
      %s81 = sphi 0, %s65
      %s89 = sphi 0, %s91
      %s92 = sphi 0, %s89
      %s93 = sphi 0, %s92
      %s109 = sphi 0, %s93
    $region4: #{tpu_custom_call.1} parent=1 // loop_header_branch
      %14 = sbr.rel (%p12) target = $region8
    $region5: #{tpu_custom_call.1} parent=1 // loop_body
      %s16 = ssub.s32 %s11, 1
      %s17 = ssub.s32 %s11, 2
      %s24 = sadd.s32 1, %s19
      %p25 = scmp.ge.s32.totalorder %s24, 1
      %s26 = scalar_select %p25, 0, %s24
      %s27 = sadd.s32 1, %s18
      %s28 = scalar_select %p25, %s27, %s18
      %p29 = scmp.ge.s32.totalorder %s28, 2
      %s30 = scalar_select %p29, 0, %s28
      %s31 = ssub.s32 %s18, %s30
      %s32 = ssub.s32 %s19, %s26
      %s33 = sor.u32 %s31, %s32
      %p34 = scmp.eq.s32.totalorder %s33, 0
      %s36 = sadd.s32 %s35, 1
      %s37 = scalar_select %p34, %s35, %s36
      %p40 = pneg %p34
      %p41 = scmp.eq.s32.totalorder %s11, 1
      %p42 = por %p40, %p41
      %p43 = scmp.ne.s32.totalorder %s35, %s38
      %p44 = scmp.eq.s32.totalorder %s11, 0
      %p45 = por %p43, %p44
      %p46 = scmp.ne.s32.totalorder %s35, %s38
      %p47 = scmp.eq.s32.totalorder %s16, 1
      %p48 = por %p46, %p47
      %p49 = scmp.ne.s32.totalorder %s38, %s39
      %p50 = scmp.eq.s32.totalorder %s16, 0
      %p51 = por %p49, %p50
      %p52 = scmp.ne.s32.totalorder %s38, %s39
      %p53 = scmp.eq.s32.totalorder %s17, 1
      %p54 = por %p52, %p53
      %p56 = scmp.ne.s32.totalorder %s39, %s55
      %p57 = scmp.eq.s32.totalorder %s17, 0
      %p58 = por %p56, %p57
      %s59 = ssub.s32 %s18, %s30
      %p60 = scmp.eq.s32.totalorder %s59, 0
      %s62 = sadd.s32 %s61, 1
      %s63 = scalar_select %p60, %s61, %s62
      %p66 = pneg %p60
      %p67 = scmp.eq.s32.totalorder %s11, 1
      %p68 = por %p66, %p67
      %p69 = scmp.ne.s32.totalorder %s61, %s64
      %p70 = scmp.eq.s32.totalorder %s11, 0
      %p71 = por %p69, %p70
      %p72 = scmp.ne.s32.totalorder %s61, %s64
      %p73 = scmp.eq.s32.totalorder %s16, 1
      %p74 = por %p72, %p73
      %p75 = scmp.ne.s32.totalorder %s64, %s65
      %p76 = scmp.eq.s32.totalorder %s16, 0
      %p77 = por %p75, %p76
      %p78 = scmp.ne.s32.totalorder %s64, %s65
      %p79 = scmp.eq.s32.totalorder %s17, 1
      %p80 = por %p78, %p79
      %p82 = scmp.ne.s32.totalorder %s65, %s81
      %p83 = scmp.eq.s32.totalorder %s17, 0
      %p84 = por %p82, %p83
      %s85 = ssub.s32 %s18, %s30
      %s86 = ssub.s32 %s19, %s26
      %s87 = sor.u32 %s85, %s86
      %p88 = scmp.eq.s32.totalorder %s87, 0
      %s90 = sadd.s32 %s89, 1
      %s91 = scalar_select %p88, %s89, %s90
      %p94 = pneg %p88
      %p95 = scmp.eq.s32.totalorder %s11, 1
      %p96 = por %p94, %p95
      %p97 = scmp.ne.s32.totalorder %s89, %s92
      %p98 = scmp.eq.s32.totalorder %s11, 0
      %p99 = por %p97, %p98
      %p100 = scmp.ne.s32.totalorder %s89, %s92
      %p101 = scmp.eq.s32.totalorder %s16, 1
      %p102 = por %p100, %p101
      %p103 = scmp.ne.s32.totalorder %s92, %s93
      %p104 = scmp.eq.s32.totalorder %s16, 0
      %p105 = por %p103, %p104
      %p106 = scmp.ne.s32.totalorder %s92, %s93
      %p107 = scmp.eq.s32.totalorder %s17, 1
      %p108 = por %p106, %p107
      %p110 = scmp.ne.s32.totalorder %s93, %s109
      %p111 = scmp.eq.s32.totalorder %s17, 0
      %p112 = por %p110, %p111
      %p113 = scmp.le.s32.totalorder 1, %s11
      %p114 = scmp.lt.s32.totalorder %s11, 3
      %p115 = pnand %p113, %p114
      %p116 = pneg %p115
      // Predicated region
      $region9: #{tpu_custom_call.1} parent=5 // pred_check
        _
      $region10: #{tpu_custom_call.1} parent=5 // pred_check_branch
        %118 = sbr.rel (%p115) target = $region12
      $region11: #{tpu_custom_call.1} parent=5 // pred_region
        %s119 = ssub.s32 %s11, 1
      $region12: #{tpu_custom_call.1} parent=5 // pred_fallthru
        _
      %p120 = scmp.lt.s32.totalorder %s11, 2
      // Predicated region
      $region13: #{tpu_custom_call.1} parent=5 // pred_check
        %p121 = pneg %p120
      $region14: #{tpu_custom_call.1} parent=5 // pred_check_branch
        %123 = sbr.rel (%p121) target = $region16
      $region15: #{tpu_custom_call.1} parent=5 // pred_region
        // Predicated region
        $region17: #{tpu_custom_call.1} parent=15 // pred_check
          %p124 = pneg %p45
        $region18: #{tpu_custom_call.1} parent=15 // pred_check_branch
          %126 = sbr.rel (%p124) target = $region20
        $region19: #{tpu_custom_call.1} parent=15 // pred_region
          %p127 = scmp.lt.s32.totalorder %s18, 1
          %s128 = scalar_select %p127, %s18, 1
          %p129 = scmp.lt.s32.totalorder %s19, 0
          %s130 = scalar_select %p129, %s19, 0
          %s131 = sadd.s32 %s130, %s128
          %s132 = smul.addr %s131, 4
          %s133 = scalar_lea.vmem %s0, %s132
        $region20: #{tpu_custom_call.1} parent=15 // pred_fallthru
          _
        // Predicated region
        $region21: #{tpu_custom_call.1} parent=15 // pred_check
          %p134 = pneg %p71
        $region22: #{tpu_custom_call.1} parent=15 // pred_check_branch
          %136 = sbr.rel (%p134) target = $region24
        $region23: #{tpu_custom_call.1} parent=15 // pred_region
          %p137 = scmp.lt.s32.totalorder %s18, 1
          %s138 = scalar_select %p137, %s18, 1
          %s139 = smul.addr %s138, 8
          %s140 = smul.addr %s139, 8
          %s141 = scalar_lea.vmem %s1, %s140
        $region24: #{tpu_custom_call.1} parent=15 // pred_fallthru
          _
      $region16: #{tpu_custom_call.1} parent=5 // pred_fallthru
        _
      %p142 = scmp.le.s32.totalorder 1, %s11
      %p143 = scmp.lt.s32.totalorder %s11, 3
      %p144 = pnand %p142, %p143
      %p145 = pneg %p144
      // Predicated region
      $region25: #{tpu_custom_call.1} parent=5 // pred_check
        _
      $region26: #{tpu_custom_call.1} parent=5 // pred_check_branch
        %147 = sbr.rel (%p144) target = $region28
      $region27: #{tpu_custom_call.1} parent=5 // pred_region
        %s148 = ssub.s32 %s11, 1
        %p149 = scmp.lt.s32.totalorder %s20, 1
        %s150 = scalar_select %p149, %s20, 1
        %p151 = scmp.lt.s32.totalorder %s21, 0
        %s152 = scalar_select %p151, %s21, 0
        %s153 = sadd.s32 %s152, %s150
        %s154 = smul.addr %s153, 4
        %s155 = scalar_lea.vmem %s0, %s154
        %p156 = pneg %p51
        %p157 = pneg %p48
        %p158 = scmp.lt.s32.totalorder %s20, 1
        %s159 = scalar_select %p158, %s20, 1
        %s160 = smul.addr %s159, 8
        %s161 = smul.addr %s160, 8
        %s162 = scalar_lea.vmem %s1, %s161
        %p163 = pneg %p77
        %p164 = pneg %p74
        %p165 = pneg %p105
        %p166 = pneg %p102
        %s167 = sand.u32 %s92, 1
        %s168 = scalar_lea.sflag [#allocation3], %s167
        %s169 = sand.u32 %s92, 1
        %s170 = smul.addr %s169, 8
        %s171 = scalar_lea.vmem [#allocation2], %s170
        %p172 = scmp.lt.s32.totalorder %s20, 1
        %s173 = scalar_select %p172, %s20, 1
        %p174 = scmp.lt.s32.totalorder %s21, 0
        %s175 = scalar_select %p174, %s21, 0
        %s176 = sadd.s32 %s175, %s173
        %s177 = smul.addr %s176, 4
        %s178 = scalar_lea.vmem %s0, %s177
        %p179 = scmp.lt.s32.totalorder %s20, 1
        %s180 = scalar_select %p179, %s20, 1
        %s181 = smul.addr %s180, 8
        %s182 = smul.addr %s181, 8
        %s183 = scalar_lea.vmem %s1, %s182
        %v184 = vld [vmem:[%s178] sm:$0x7]
        %v185 = vld [vmem:[%s183] sm:$0xff]
        %v186 = vld [vmem:[%s183 + $0x8] sm:$0xff]
        %v187 = vld [vmem:[%s183 + $0x10] sm:$0xff]
        %v188 = vld [vmem:[%s183 + $0x18] sm:$0xff]
        %v189 = vld [vmem:[%s183 + $0x20] sm:$0xff]
        %v190 = vld [vmem:[%s183 + $0x28] sm:$0xff]
        %v191 = vld [vmem:[%s183 + $0x30] sm:$0xff]
        %v192 = vld [vmem:[%s183 + $0x38] sm:$0xff]
        %194 = vset.pattern.permute.xlu0 0
        %195 = vperm.xlu0 %194, %v185
        %v196 = vpop.permute.xlu0 %195
        %199 = vset.pattern.permute.xlu0 0
        %200 = vperm.xlu0 %199, %v186
        %v201 = vpop.permute.xlu0 %200
        %204 = vset.pattern.permute.xlu0 0
        %205 = vperm.xlu0 %204, %v187
        %v206 = vpop.permute.xlu0 %205
        %209 = vset.pattern.permute.xlu0 0
        %210 = vperm.xlu0 %209, %v188
        %v211 = vpop.permute.xlu0 %210
        %214 = vset.pattern.permute.xlu0 0
        %215 = vperm.xlu0 %214, %v189
        %v216 = vpop.permute.xlu0 %215
        %219 = vset.pattern.permute.xlu0 0
        %220 = vperm.xlu0 %219, %v190
        %v221 = vpop.permute.xlu0 %220
        %224 = vset.pattern.permute.xlu0 0
        %225 = vperm.xlu0 %224, %v191
        %v226 = vpop.permute.xlu0 %225
        %229 = vset.pattern.permute.xlu0 0
        %230 = vperm.xlu0 %229, %v192
        %v231 = vpop.permute.xlu0 %230
        %v233 = vlaneseq
        %v234 = vshrl.u32 %v233, 7
        %v235 = vsub.s32 0, %v234
        %v236 = vrot.slane %v184, %v235
        %v237 = vsub.f32 %v196, %v236
        %v238 = vsub.f32 %v201, %v236
        %v239 = vsub.f32 %v206, %v236
        %v240 = vsub.f32 %v211, %v236
        %v241 = vsub.f32 %v216, %v236
        %v242 = vsub.f32 %v221, %v236
        %v243 = vsub.f32 %v226, %v236
        %v244 = vsub.f32 %v231, %v236
        %245 = vset.pattern.permute.xlu0 1
        %246 = vperm.xlu0 %245, %v185
        %v247 = vpop.permute.xlu0 %246
        %249 = vset.pattern.permute.xlu0 1
        %250 = vperm.xlu0 %249, %v186
        %v251 = vpop.permute.xlu0 %250
        %253 = vset.pattern.permute.xlu0 1
        %254 = vperm.xlu0 %253, %v187
        %v255 = vpop.permute.xlu0 %254
        %257 = vset.pattern.permute.xlu0 1
        %258 = vperm.xlu0 %257, %v188
        %v259 = vpop.permute.xlu0 %258
        %261 = vset.pattern.permute.xlu0 1
        %262 = vperm.xlu0 %261, %v189
        %v263 = vpop.permute.xlu0 %262
        %265 = vset.pattern.permute.xlu0 1
        %266 = vperm.xlu0 %265, %v190
        %v267 = vpop.permute.xlu0 %266
        %269 = vset.pattern.permute.xlu0 1
        %270 = vperm.xlu0 %269, %v191
        %v271 = vpop.permute.xlu0 %270
        %273 = vset.pattern.permute.xlu0 1
        %274 = vperm.xlu0 %273, %v192
        %v275 = vpop.permute.xlu0 %274
        %v277 = vlaneseq
        %v278 = vshrl.u32 %v277, 7
        %v279 = vsub.s32 1, %v278
        %v280 = vrot.slane %v184, %v279
        %v281 = vsub.f32 %v247, %v280
        %v282 = vsub.f32 %v251, %v280
        %v283 = vsub.f32 %v255, %v280
        %v284 = vsub.f32 %v259, %v280
        %v285 = vsub.f32 %v263, %v280
        %v286 = vsub.f32 %v267, %v280
        %v287 = vsub.f32 %v271, %v280
        %v288 = vsub.f32 %v275, %v280
        %289 = vset.pattern.permute.xlu0 2
        %290 = vperm.xlu0 %289, %v185
        %v291 = vpop.permute.xlu0 %290
        %293 = vset.pattern.permute.xlu0 2
        %294 = vperm.xlu0 %293, %v186
        %v295 = vpop.permute.xlu0 %294
        %297 = vset.pattern.permute.xlu0 2
        %298 = vperm.xlu0 %297, %v187
        %v299 = vpop.permute.xlu0 %298
        %301 = vset.pattern.permute.xlu0 2
        %302 = vperm.xlu0 %301, %v188
        %v303 = vpop.permute.xlu0 %302
        %305 = vset.pattern.permute.xlu0 2
        %306 = vperm.xlu0 %305, %v189
        %v307 = vpop.permute.xlu0 %306
        %309 = vset.pattern.permute.xlu0 2
        %310 = vperm.xlu0 %309, %v190
        %v311 = vpop.permute.xlu0 %310
        %313 = vset.pattern.permute.xlu0 2
        %314 = vperm.xlu0 %313, %v191
        %v315 = vpop.permute.xlu0 %314
        %317 = vset.pattern.permute.xlu0 2
        %318 = vperm.xlu0 %317, %v192
        %v319 = vpop.permute.xlu0 %318
        %v321 = vlaneseq
        %v322 = vshrl.u32 %v321, 7
        %v323 = vsub.s32 2, %v322
        %v324 = vrot.slane %v184, %v323
        %v325 = vsub.f32 %v291, %v324
        %v326 = vsub.f32 %v295, %v324
        %v327 = vsub.f32 %v299, %v324
        %v328 = vsub.f32 %v303, %v324
        %v329 = vsub.f32 %v307, %v324
        %v330 = vsub.f32 %v311, %v324
        %v331 = vsub.f32 %v315, %v324
        %v332 = vsub.f32 %v319, %v324
        %v333 = vmul.f32 %v237, %v237
        %v334 = vmul.f32 %v238, %v238
        %v335 = vmul.f32 %v239, %v239
        %v336 = vmul.f32 %v240, %v240
        %v337 = vmul.f32 %v241, %v241
        %v338 = vmul.f32 %v242, %v242
        %v339 = vmul.f32 %v243, %v243
        %v340 = vmul.f32 %v244, %v244
        %v341 = vmul.f32 %v281, %v281
        %v342 = vmul.f32 %v282, %v282
        %v343 = vmul.f32 %v283, %v283
        %v344 = vmul.f32 %v284, %v284
        %v345 = vmul.f32 %v285, %v285
        %v346 = vmul.f32 %v286, %v286
        %v347 = vmul.f32 %v287, %v287
        %v348 = vmul.f32 %v288, %v288
        %v349 = vadd.f32 %v333, %v341
        %v350 = vadd.f32 %v334, %v342
        %v351 = vadd.f32 %v335, %v343
        %v352 = vadd.f32 %v336, %v344
        %v353 = vadd.f32 %v337, %v345
        %v354 = vadd.f32 %v338, %v346
        %v355 = vadd.f32 %v339, %v347
        %v356 = vadd.f32 %v340, %v348
        %v357 = vmul.f32 %v325, %v325
        %v358 = vmul.f32 %v326, %v326
        %v359 = vmul.f32 %v327, %v327
        %v360 = vmul.f32 %v328, %v328
        %v361 = vmul.f32 %v329, %v329
        %v362 = vmul.f32 %v330, %v330
        %v363 = vmul.f32 %v331, %v331
        %v364 = vmul.f32 %v332, %v332
        %v365 = vadd.f32 %v349, %v357
        %v366 = vadd.f32 %v350, %v358
        %v367 = vadd.f32 %v351, %v359
        %v368 = vadd.f32 %v352, %v360
        %v369 = vadd.f32 %v353, %v361
        %v370 = vadd.f32 %v354, %v362
        %v371 = vadd.f32 %v355, %v363
        %v372 = vadd.f32 %v356, %v364
        %v373 = vlaneseq
        %v374 = vshrl.u32 %v373, 7
        %v375 = vadd.s32 %v374, 8
        %v376 = vadd.s32 %v374, 16
        %v377 = vadd.s32 %v374, 24
        %v378 = vadd.s32 %v374, 32
        %v379 = vadd.s32 %v374, 40
        %v380 = vadd.s32 %v374, 48
        %v381 = vadd.s32 %v374, 56
        %vm382 = vcmp.gt.f32.partialorder %v365, 0.16
        %vm383 = vcmp.gt.f32.partialorder %v366, 0.16
        %vm384 = vcmp.gt.f32.partialorder %v367, 0.16
        %vm385 = vcmp.gt.f32.partialorder %v368, 0.16
        %vm386 = vcmp.gt.f32.partialorder %v369, 0.16
        %vm387 = vcmp.gt.f32.partialorder %v370, 0.16
        %vm388 = vcmp.gt.f32.partialorder %v371, 0.16
        %vm389 = vcmp.gt.f32.partialorder %v372, 0.16
        %vm390 = vmxor %vm382, 1
        %vm391 = vmxor %vm383, 1
        %vm392 = vmxor %vm384, 1
        %vm393 = vmxor %vm385, 1
        %vm394 = vmxor %vm386, 1
        %vm395 = vmxor %vm387, 1
        %vm396 = vmxor %vm388, 1
        %vm397 = vmxor %vm389, 1
        %vm398 = vcmp.lt.s32.totalorder %v374, 64
        %vm399 = vcmp.lt.s32.totalorder %v375, 64
        %vm400 = vcmp.lt.s32.totalorder %v376, 64
        %vm401 = vcmp.lt.s32.totalorder %v377, 64
        %vm402 = vcmp.lt.s32.totalorder %v378, 64
        %vm403 = vcmp.lt.s32.totalorder %v379, 64
        %vm404 = vcmp.lt.s32.totalorder %v380, 64
        %vm405 = vcmp.lt.s32.totalorder %v381, 64
        %vm406 = vmand %vm390, %vm398
        %vm407 = vmand %vm391, %vm399
        %vm408 = vmand %vm392, %vm400
        %vm409 = vmand %vm393, %vm401
        %vm410 = vmand %vm394, %vm402
        %vm411 = vmand %vm395, %vm403
        %vm412 = vmand %vm396, %vm404
        %vm413 = vmand %vm397, %vm405
        %v414 = vsel %vm406, %v374, 64
        %v415 = vsel %vm407, %v375, 64
        %v416 = vsel %vm408, %v376, 64
        %v417 = vsel %vm409, %v377, 64
        %v418 = vsel %vm410, %v378, 64
        %v419 = vsel %vm411, %v379, 64
        %v420 = vsel %vm412, %v380, 64
        %v421 = vsel %vm413, %v381, 64
        %vm422 = vcmp.gt.s32.totalorder %v414, 4294967295
        %vm423 = vcmp.gt.s32.totalorder %v415, 4294967295
        %vm424 = vcmp.gt.s32.totalorder %v416, 4294967295
        %vm425 = vcmp.gt.s32.totalorder %v417, 4294967295
        %vm426 = vcmp.gt.s32.totalorder %v418, 4294967295
        %vm427 = vcmp.gt.s32.totalorder %v419, 4294967295
        %vm428 = vcmp.gt.s32.totalorder %v420, 4294967295
        %vm429 = vcmp.gt.s32.totalorder %v421, 4294967295
        %v430 = vsel %vm422, %v414, 64
        %v431 = vsel %vm423, %v415, 64
        %v432 = vsel %vm424, %v416, 64
        %v433 = vsel %vm425, %v417, 64
        %v434 = vsel %vm426, %v418, 64
        %v435 = vsel %vm427, %v419, 64
        %v436 = vsel %vm428, %v420, 64
        %v437 = vsel %vm429, %v421, 64
        %vm438 = vcmp.lt.s32.totalorder %v430, %v434
        %v439 = vsel %vm438, %v430, %v434
        %vm440 = vcmp.lt.s32.totalorder %v431, %v435
        %v441 = vsel %vm440, %v431, %v435
        %vm442 = vcmp.lt.s32.totalorder %v432, %v436
        %v443 = vsel %vm442, %v432, %v436
        %vm444 = vcmp.lt.s32.totalorder %v433, %v437
        %v445 = vsel %vm444, %v433, %v437
        %vm446 = vcmp.lt.s32.totalorder %v439, %v441
        %v447 = vsel %vm446, %v439, %v441
        %vm448 = vcmp.lt.s32.totalorder %v443, %v445
        %v449 = vsel %vm448, %v443, %v445
        %vm450 = vcmp.lt.s32.totalorder %v447, %v449
        %v451 = vsel %vm450, %v447, %v449
        %v452 = vrot.slane %v451, 4
        %vm453 = vcmp.lt.s32.totalorder %v451, %v452
        %v454 = vsel %vm453, %v451, %v452
        %v455 = vrot.slane %v454, 2
        %vm456 = vcmp.lt.s32.totalorder %v454, %v455
        %v457 = vsel %vm456, %v454, %v455
        %v458 = vrot.slane %v457, 1
        %vm459 = vcmp.lt.s32.totalorder %v457, %v458
        %v460 = vsel %vm459, %v457, %v458
        %461 = vst [vmem:[%s171] sm:$0x1] %v460
        %vm462 = vcmp.gt.s32.totalorder %v414, %v460
        %vm463 = vcmp.gt.s32.totalorder %v415, %v460
        %vm464 = vcmp.gt.s32.totalorder %v416, %v460
        %vm465 = vcmp.gt.s32.totalorder %v417, %v460
        %vm466 = vcmp.gt.s32.totalorder %v418, %v460
        %vm467 = vcmp.gt.s32.totalorder %v419, %v460
        %vm468 = vcmp.gt.s32.totalorder %v420, %v460
        %vm469 = vcmp.gt.s32.totalorder %v421, %v460
        %v470 = vsel %vm462, %v414, 64
        %v471 = vsel %vm463, %v415, 64
        %v472 = vsel %vm464, %v416, 64
        %v473 = vsel %vm465, %v417, 64
        %v474 = vsel %vm466, %v418, 64
        %v475 = vsel %vm467, %v419, 64
        %v476 = vsel %vm468, %v420, 64
        %v477 = vsel %vm469, %v421, 64
        %vm478 = vcmp.lt.s32.totalorder %v470, %v474
        %v479 = vsel %vm478, %v470, %v474
        %vm480 = vcmp.lt.s32.totalorder %v471, %v475
        %v481 = vsel %vm480, %v471, %v475
        %vm482 = vcmp.lt.s32.totalorder %v472, %v476
        %v483 = vsel %vm482, %v472, %v476
        %vm484 = vcmp.lt.s32.totalorder %v473, %v477
        %v485 = vsel %vm484, %v473, %v477
        %vm486 = vcmp.lt.s32.totalorder %v479, %v481
        %v487 = vsel %vm486, %v479, %v481
        %vm488 = vcmp.lt.s32.totalorder %v483, %v485
        %v489 = vsel %vm488, %v483, %v485
        %vm490 = vcmp.lt.s32.totalorder %v487, %v489
        %v491 = vsel %vm490, %v487, %v489
        %v492 = vrot.slane %v491, 4
        %vm493 = vcmp.lt.s32.totalorder %v491, %v492
        %v494 = vsel %vm493, %v491, %v492
        %v495 = vrot.slane %v494, 2
        %vm496 = vcmp.lt.s32.totalorder %v494, %v495
        %v497 = vsel %vm496, %v494, %v495
        %v498 = vrot.slane %v497, 1
        %vm499 = vcmp.lt.s32.totalorder %v497, %v498
        %v500 = vsel %vm499, %v497, %v498
        %vm501 = vcmp.eq.s32.totalorder %v500, 64
        %v502 = vsel %vm501, %v460, %v500
        %503 = vst [vmem:[%s171 + $0x1] sm:$0x1] %v502
        %vm504 = vcmp.gt.s32.totalorder %v414, %v500
        %vm505 = vcmp.gt.s32.totalorder %v415, %v500
        %vm506 = vcmp.gt.s32.totalorder %v416, %v500
        %vm507 = vcmp.gt.s32.totalorder %v417, %v500
        %vm508 = vcmp.gt.s32.totalorder %v418, %v500
        %vm509 = vcmp.gt.s32.totalorder %v419, %v500
        %vm510 = vcmp.gt.s32.totalorder %v420, %v500
        %vm511 = vcmp.gt.s32.totalorder %v421, %v500
        %v512 = vsel %vm504, %v414, 64
        %v513 = vsel %vm505, %v415, 64
        %v514 = vsel %vm506, %v416, 64
        %v515 = vsel %vm507, %v417, 64
        %v516 = vsel %vm508, %v418, 64
        %v517 = vsel %vm509, %v419, 64
        %v518 = vsel %vm510, %v420, 64
        %v519 = vsel %vm511, %v421, 64
        %vm520 = vcmp.lt.s32.totalorder %v512, %v516
        %v521 = vsel %vm520, %v512, %v516
        %vm522 = vcmp.lt.s32.totalorder %v513, %v517
        %v523 = vsel %vm522, %v513, %v517
        %vm524 = vcmp.lt.s32.totalorder %v514, %v518
        %v525 = vsel %vm524, %v514, %v518
        %vm526 = vcmp.lt.s32.totalorder %v515, %v519
        %v527 = vsel %vm526, %v515, %v519
        %vm528 = vcmp.lt.s32.totalorder %v521, %v523
        %v529 = vsel %vm528, %v521, %v523
        %vm530 = vcmp.lt.s32.totalorder %v525, %v527
        %v531 = vsel %vm530, %v525, %v527
        %vm532 = vcmp.lt.s32.totalorder %v529, %v531
        %v533 = vsel %vm532, %v529, %v531
        %v534 = vrot.slane %v533, 4
        %vm535 = vcmp.lt.s32.totalorder %v533, %v534
        %v536 = vsel %vm535, %v533, %v534
        %v537 = vrot.slane %v536, 2
        %vm538 = vcmp.lt.s32.totalorder %v536, %v537
        %v539 = vsel %vm538, %v536, %v537
        %v540 = vrot.slane %v539, 1
        %vm541 = vcmp.lt.s32.totalorder %v539, %v540
        %v542 = vsel %vm541, %v539, %v540
        %vm543 = vcmp.eq.s32.totalorder %v542, 64
        %v544 = vsel %vm543, %v460, %v542
        %545 = vst [vmem:[%s171 + $0x2] sm:$0x1] %v544
        %vm546 = vcmp.gt.s32.totalorder %v414, %v542
        %vm547 = vcmp.gt.s32.totalorder %v415, %v542
        %vm548 = vcmp.gt.s32.totalorder %v416, %v542
        %vm549 = vcmp.gt.s32.totalorder %v417, %v542
        %vm550 = vcmp.gt.s32.totalorder %v418, %v542
        %vm551 = vcmp.gt.s32.totalorder %v419, %v542
        %vm552 = vcmp.gt.s32.totalorder %v420, %v542
        %vm553 = vcmp.gt.s32.totalorder %v421, %v542
        %v554 = vsel %vm546, %v414, 64
        %v555 = vsel %vm547, %v415, 64
        %v556 = vsel %vm548, %v416, 64
        %v557 = vsel %vm549, %v417, 64
        %v558 = vsel %vm550, %v418, 64
        %v559 = vsel %vm551, %v419, 64
        %v560 = vsel %vm552, %v420, 64
        %v561 = vsel %vm553, %v421, 64
        %vm562 = vcmp.lt.s32.totalorder %v554, %v558
        %v563 = vsel %vm562, %v554, %v558
        %vm564 = vcmp.lt.s32.totalorder %v555, %v559
        %v565 = vsel %vm564, %v555, %v559
        %vm566 = vcmp.lt.s32.totalorder %v556, %v560
        %v567 = vsel %vm566, %v556, %v560
        %vm568 = vcmp.lt.s32.totalorder %v557, %v561
        %v569 = vsel %vm568, %v557, %v561
        %vm570 = vcmp.lt.s32.totalorder %v563, %v565
        %v571 = vsel %vm570, %v563, %v565
        %vm572 = vcmp.lt.s32.totalorder %v567, %v569
        %v573 = vsel %vm572, %v567, %v569
        %vm574 = vcmp.lt.s32.totalorder %v571, %v573
        %v575 = vsel %vm574, %v571, %v573
        %v576 = vrot.slane %v575, 4
        %vm577 = vcmp.lt.s32.totalorder %v575, %v576
        %v578 = vsel %vm577, %v575, %v576
        %v579 = vrot.slane %v578, 2
        %vm580 = vcmp.lt.s32.totalorder %v578, %v579
        %v581 = vsel %vm580, %v578, %v579
        %v582 = vrot.slane %v581, 1
        %vm583 = vcmp.lt.s32.totalorder %v581, %v582
        %v584 = vsel %vm583, %v581, %v582
        %vm585 = vcmp.eq.s32.totalorder %v584, 64
        %v586 = vsel %vm585, %v460, %v584
        %587 = vst [vmem:[%s171 + $0x3] sm:$0x1] %v586
        %vm588 = vcmp.gt.s32.totalorder %v414, %v584
        %vm589 = vcmp.gt.s32.totalorder %v415, %v584
        %vm590 = vcmp.gt.s32.totalorder %v416, %v584
        %vm591 = vcmp.gt.s32.totalorder %v417, %v584
        %vm592 = vcmp.gt.s32.totalorder %v418, %v584
        %vm593 = vcmp.gt.s32.totalorder %v419, %v584
        %vm594 = vcmp.gt.s32.totalorder %v420, %v584
        %vm595 = vcmp.gt.s32.totalorder %v421, %v584
        %v596 = vsel %vm588, %v414, 64
        %v597 = vsel %vm589, %v415, 64
        %v598 = vsel %vm590, %v416, 64
        %v599 = vsel %vm591, %v417, 64
        %v600 = vsel %vm592, %v418, 64
        %v601 = vsel %vm593, %v419, 64
        %v602 = vsel %vm594, %v420, 64
        %v603 = vsel %vm595, %v421, 64
        %vm604 = vcmp.lt.s32.totalorder %v596, %v600
        %v605 = vsel %vm604, %v596, %v600
        %vm606 = vcmp.lt.s32.totalorder %v597, %v601
        %v607 = vsel %vm606, %v597, %v601
        %vm608 = vcmp.lt.s32.totalorder %v598, %v602
        %v609 = vsel %vm608, %v598, %v602
        %vm610 = vcmp.lt.s32.totalorder %v599, %v603
        %v611 = vsel %vm610, %v599, %v603
        %vm612 = vcmp.lt.s32.totalorder %v605, %v607
        %v613 = vsel %vm612, %v605, %v607
        %vm614 = vcmp.lt.s32.totalorder %v609, %v611
        %v615 = vsel %vm614, %v609, %v611
        %vm616 = vcmp.lt.s32.totalorder %v613, %v615
        %v617 = vsel %vm616, %v613, %v615
        %v618 = vrot.slane %v617, 4
        %vm619 = vcmp.lt.s32.totalorder %v617, %v618
        %v620 = vsel %vm619, %v617, %v618
        %v621 = vrot.slane %v620, 2
        %vm622 = vcmp.lt.s32.totalorder %v620, %v621
        %v623 = vsel %vm622, %v620, %v621
        %v624 = vrot.slane %v623, 1
        %vm625 = vcmp.lt.s32.totalorder %v623, %v624
        %v626 = vsel %vm625, %v623, %v624
        %vm627 = vcmp.eq.s32.totalorder %v626, 64
        %v628 = vsel %vm627, %v460, %v626
        %629 = vst [vmem:[%s171 + $0x4] sm:$0x1] %v628
        %vm630 = vcmp.gt.s32.totalorder %v414, %v626
        %vm631 = vcmp.gt.s32.totalorder %v415, %v626
        %vm632 = vcmp.gt.s32.totalorder %v416, %v626
        %vm633 = vcmp.gt.s32.totalorder %v417, %v626
        %vm634 = vcmp.gt.s32.totalorder %v418, %v626
        %vm635 = vcmp.gt.s32.totalorder %v419, %v626
        %vm636 = vcmp.gt.s32.totalorder %v420, %v626
        %vm637 = vcmp.gt.s32.totalorder %v421, %v626
        %v638 = vsel %vm630, %v414, 64
        %v639 = vsel %vm631, %v415, 64
        %v640 = vsel %vm632, %v416, 64
        %v641 = vsel %vm633, %v417, 64
        %v642 = vsel %vm634, %v418, 64
        %v643 = vsel %vm635, %v419, 64
        %v644 = vsel %vm636, %v420, 64
        %v645 = vsel %vm637, %v421, 64
        %vm646 = vcmp.lt.s32.totalorder %v638, %v642
        %v647 = vsel %vm646, %v638, %v642
        %vm648 = vcmp.lt.s32.totalorder %v639, %v643
        %v649 = vsel %vm648, %v639, %v643
        %vm650 = vcmp.lt.s32.totalorder %v640, %v644
        %v651 = vsel %vm650, %v640, %v644
        %vm652 = vcmp.lt.s32.totalorder %v641, %v645
        %v653 = vsel %vm652, %v641, %v645
        %vm654 = vcmp.lt.s32.totalorder %v647, %v649
        %v655 = vsel %vm654, %v647, %v649
        %vm656 = vcmp.lt.s32.totalorder %v651, %v653
        %v657 = vsel %vm656, %v651, %v653
        %vm658 = vcmp.lt.s32.totalorder %v655, %v657
        %v659 = vsel %vm658, %v655, %v657
        %v660 = vrot.slane %v659, 4
        %vm661 = vcmp.lt.s32.totalorder %v659, %v660
        %v662 = vsel %vm661, %v659, %v660
        %v663 = vrot.slane %v662, 2
        %vm664 = vcmp.lt.s32.totalorder %v662, %v663
        %v665 = vsel %vm664, %v662, %v663
        %v666 = vrot.slane %v665, 1
        %vm667 = vcmp.lt.s32.totalorder %v665, %v666
        %v668 = vsel %vm667, %v665, %v666
        %vm669 = vcmp.eq.s32.totalorder %v668, 64
        %v670 = vsel %vm669, %v460, %v668
        %671 = vst [vmem:[%s171 + $0x5] sm:$0x1] %v670
        %vm672 = vcmp.gt.s32.totalorder %v414, %v668
        %vm673 = vcmp.gt.s32.totalorder %v415, %v668
        %vm674 = vcmp.gt.s32.totalorder %v416, %v668
        %vm675 = vcmp.gt.s32.totalorder %v417, %v668
        %vm676 = vcmp.gt.s32.totalorder %v418, %v668
        %vm677 = vcmp.gt.s32.totalorder %v419, %v668
        %vm678 = vcmp.gt.s32.totalorder %v420, %v668
        %vm679 = vcmp.gt.s32.totalorder %v421, %v668
        %v680 = vsel %vm672, %v414, 64
        %v681 = vsel %vm673, %v415, 64
        %v682 = vsel %vm674, %v416, 64
        %v683 = vsel %vm675, %v417, 64
        %v684 = vsel %vm676, %v418, 64
        %v685 = vsel %vm677, %v419, 64
        %v686 = vsel %vm678, %v420, 64
        %v687 = vsel %vm679, %v421, 64
        %vm688 = vcmp.lt.s32.totalorder %v680, %v684
        %v689 = vsel %vm688, %v680, %v684
        %vm690 = vcmp.lt.s32.totalorder %v681, %v685
        %v691 = vsel %vm690, %v681, %v685
        %vm692 = vcmp.lt.s32.totalorder %v682, %v686
        %v693 = vsel %vm692, %v682, %v686
        %vm694 = vcmp.lt.s32.totalorder %v683, %v687
        %v695 = vsel %vm694, %v683, %v687
        %vm696 = vcmp.lt.s32.totalorder %v689, %v691
        %v697 = vsel %vm696, %v689, %v691
        %vm698 = vcmp.lt.s32.totalorder %v693, %v695
        %v699 = vsel %vm698, %v693, %v695
        %vm700 = vcmp.lt.s32.totalorder %v697, %v699
        %v701 = vsel %vm700, %v697, %v699
        %v702 = vrot.slane %v701, 4
        %vm703 = vcmp.lt.s32.totalorder %v701, %v702
        %v704 = vsel %vm703, %v701, %v702
        %v705 = vrot.slane %v704, 2
        %vm706 = vcmp.lt.s32.totalorder %v704, %v705
        %v707 = vsel %vm706, %v704, %v705
        %v708 = vrot.slane %v707, 1
        %vm709 = vcmp.lt.s32.totalorder %v707, %v708
        %v710 = vsel %vm709, %v707, %v708
        %vm711 = vcmp.eq.s32.totalorder %v710, 64
        %v712 = vsel %vm711, %v460, %v710
        %713 = vst [vmem:[%s171 + $0x6] sm:$0x1] %v712
        %vm714 = vcmp.gt.s32.totalorder %v414, %v710
        %vm715 = vcmp.gt.s32.totalorder %v415, %v710
        %vm716 = vcmp.gt.s32.totalorder %v416, %v710
        %vm717 = vcmp.gt.s32.totalorder %v417, %v710
        %vm718 = vcmp.gt.s32.totalorder %v418, %v710
        %vm719 = vcmp.gt.s32.totalorder %v419, %v710
        %vm720 = vcmp.gt.s32.totalorder %v420, %v710
        %vm721 = vcmp.gt.s32.totalorder %v421, %v710
        %v722 = vsel %vm714, %v414, 64
        %v723 = vsel %vm715, %v415, 64
        %v724 = vsel %vm716, %v416, 64
        %v725 = vsel %vm717, %v417, 64
        %v726 = vsel %vm718, %v418, 64
        %v727 = vsel %vm719, %v419, 64
        %v728 = vsel %vm720, %v420, 64
        %v729 = vsel %vm721, %v421, 64
        %vm730 = vcmp.lt.s32.totalorder %v722, %v726
        %v731 = vsel %vm730, %v722, %v726
        %vm732 = vcmp.lt.s32.totalorder %v723, %v727
        %v733 = vsel %vm732, %v723, %v727
        %vm734 = vcmp.lt.s32.totalorder %v724, %v728
        %v735 = vsel %vm734, %v724, %v728
        %vm736 = vcmp.lt.s32.totalorder %v725, %v729
        %v737 = vsel %vm736, %v725, %v729
        %vm738 = vcmp.lt.s32.totalorder %v731, %v733
        %v739 = vsel %vm738, %v731, %v733
        %vm740 = vcmp.lt.s32.totalorder %v735, %v737
        %v741 = vsel %vm740, %v735, %v737
        %vm742 = vcmp.lt.s32.totalorder %v739, %v741
        %v743 = vsel %vm742, %v739, %v741
        %v744 = vrot.slane %v743, 4
        %vm745 = vcmp.lt.s32.totalorder %v743, %v744
        %v746 = vsel %vm745, %v743, %v744
        %v747 = vrot.slane %v746, 2
        %vm748 = vcmp.lt.s32.totalorder %v746, %v747
        %v749 = vsel %vm748, %v746, %v747
        %v750 = vrot.slane %v749, 1
        %vm751 = vcmp.lt.s32.totalorder %v749, %v750
        %v752 = vsel %vm751, %v749, %v750
        %vm753 = vcmp.eq.s32.totalorder %v752, 64
        %v754 = vsel %vm753, %v460, %v752
        %755 = vst [vmem:[%s171 + $0x7] sm:$0x1] %v754
        %s756 = sand.u32 %s92, 1
        %s757 = scalar_lea.sflag [#allocation3], %s756
        %s758 = sand.u32 %s92, 1
        %s759 = smul.addr %s758, 8
        %s760 = scalar_lea.vmem [#allocation2], %s759
        // Predicated region
        $region29: #{tpu_custom_call.1} parent=27 // pred_check
          %p761 = pneg %p102
        $region30: #{tpu_custom_call.1} parent=27 // pred_check_branch
          %763 = sbr.rel (%p761) target = $region32
        $region31: #{tpu_custom_call.1} parent=27 // pred_region
          %s765 = ssub.s32 128, 128
          %766 = vsyncadd %s757, %s765
          %s767 = sadd.s32 %s21, %s20
          %s768 = smul.addr %s767, 128
          %s769 = scalar_lea.hbm %s2, %s768
          %s771 = sshll.u32 %s760, 4
          %s772 = int_to_ptr.vmem [resolvable:$true] %s771
          %774 = dma.vmem_to_hbm [thread:$0]  %s772, 128, %s769, %s757
        $region32: #{tpu_custom_call.1} parent=27 // pred_fallthru
          _
      $region28: #{tpu_custom_call.1} parent=5 // pred_fallthru
        _
      %p775 = scmp.le.s32.totalorder 2, %s11
      // Predicated region
      $region33: #{tpu_custom_call.1} parent=5 // pred_check
        %p776 = pneg %p775
      $region34: #{tpu_custom_call.1} parent=5 // pred_check_branch
        %778 = sbr.rel (%p776) target = $region36
      $region35: #{tpu_custom_call.1} parent=5 // pred_region
        %s779 = ssub.s32 %s11, 2
        // Predicated region
        $region37: #{tpu_custom_call.1} parent=35 // pred_check
          %p780 = pneg %p108
        $region38: #{tpu_custom_call.1} parent=35 // pred_check_branch
          %782 = sbr.rel (%p780) target = $region40
        $region39: #{tpu_custom_call.1} parent=35 // pred_region
          %s783 = sand.u32 %s93, 1
          %s784 = scalar_lea.sflag [#allocation3], %s783
          %s785 = sand.u32 %s93, 1
          %s786 = smul.addr %s785, 8
          %s787 = scalar_lea.vmem [#allocation2], %s786
          %788 = dma.done %s784, 128
        $region40: #{tpu_custom_call.1} parent=35 // pred_fallthru
          _
      $region36: #{tpu_custom_call.1} parent=5 // pred_fallthru
        _
    $region6: #{tpu_custom_call.1} parent=1 // loop_footer
      %s15 = sadd.s32 1, %s11
    $region7: #{tpu_custom_call.1} parent=1 // loop_footer_branch
      %10 = sbr.rel target = $region3
    $region8: #{tpu_custom_call.1} parent=1 // loop_exit
      _
    %789 = vsyncpa [#allocation3], 1
    %s790 = scalar_lea.sflag [#allocation3], 1
    %791 = vsyncpa %s790, 1

</llo_original>
